<compile_context>
chip_gen: v5e
topology: v5e:2x2
jax: 0.10.0
libtpu: 0.0.40
codegen_flags: <defaults>
</compile_context>

<pallas_src>
import functools

import jax
import jax.numpy as jnp
from jax.experimental import pallas as pl
from jax.experimental.pallas import tpu as pltpu


# ---------------------------------------------------------------------------
# In-kernel helpers
# ---------------------------------------------------------------------------
def _group_selector(tmod_ref):
    """Returns sel(g0, g1, g2) -> (T8, C) picking group t%3 per output row."""
    tmod = tmod_ref[...]          # (T8, 1) int32, precomputed t % 3
    is1 = tmod == 1
    is2 = tmod == 2

    def sel(g0, g1, g2):          # g*: (C,) vectors
        return jnp.where(is2, g2, jnp.where(is1, g1, g0)).astype(jnp.float32)

    return sel


def _depthwise_taps(xp_ref, w_ref, sel, *, T8, W, TB):
    """Per-sequence causal depthwise conv (no bias). Returns list of (T8, C) f32."""
    # Per-tap, per-position weights selected once (T8, C) — shared across TB.
    w_taps = [sel(w_ref[0, k], w_ref[1, k], w_ref[2, k]) for k in range(W)]
    rows = []
    for j in range(TB):                                   # static, TB is small (1-2)
        xj = xp_ref[j].astype(jnp.float32)                # (T8+W-1, C), cast once
        a = xj[0:T8, :] * w_taps[0]
        for k in range(1, W):
            a = a + xj[k:k + T8, :] * w_taps[k]
        rows.append(a)                                    # (T8, C) f32
    return rows


# ---------------------------------------------------------------------------
# Kernels
# ---------------------------------------------------------------------------
def _conv_proj_kernel(xp_ref, tmod_ref, w_ref, be_ref, fcw_ref, out_ref, *, T8, W, TB):
    # xp_ref : (TB, T8+W-1, C)  causally padded input block
    # tmod_ref:(T8, 1)          t % 3 per output row
    # w_ref  : (3, W, C)        depthwise conv weights (rtg/obs/act)
    # be_ref : (3, C)           conv bias folded through projection
    # fcw_ref: (C, C)           fc weight, pre-transposed (y = acc @ fcw)
    # out_ref: (TB, T8, C)
    sel = _group_selector(tmod_ref)
    rows = _depthwise_taps(xp_ref, w_ref, sel, T8=T8, W=W, TB=TB)
    b_sel = sel(be_ref[0], be_ref[1], be_ref[2])          # (T8, C)

    # Single MXU contraction over all rows of this block.
    acc = rows[0] if TB == 1 else jnp.concatenate(rows, axis=0)   # (TB*T8, C)
    y = jnp.dot(acc, fcw_ref[...].astype(jnp.float32),
                preferred_element_type=jnp.float32)               # (TB*T8, C)

    for j in range(TB):
        out_ref[j] = (y[j * T8:(j + 1) * T8, :] + b_sel).astype(out_ref.dtype)


def _conv_noproj_kernel(xp_ref, tmod_ref, w_ref, be_ref, out_ref, *, T8, W, TB):
    # Same as above but no projection: no fc inputs, no matmul at all.
    sel = _group_selector(tmod_ref)
    rows = _depthwise_taps(xp_ref, w_ref, sel, T8=T8, W=W, TB=TB)
    b_sel = sel(be_ref[0], be_ref[1], be_ref[2])          # raw conv bias
    for j in range(TB):
        out_ref[j] = (rows[j] + b_sel).astype(out_ref.dtype)


# ---------------------------------------------------------------------------
# Wrapper: parameter packing / padding is glue; compute lives in the kernel.
# ---------------------------------------------------------------------------
def convolution_forward(x, params, *, window_size, conv_proj=True, batch_blocks=None):
    B, T, C = x.shape
    W = window_size

    # Default: 2 parallel grid steps when possible (uses both v7x TensorCores);
    # pass batch_blocks=1 for the single-max-block layout (v5e/v6e preference).
    if batch_blocks is None:
        batch_blocks = 2 if B > 1 else 1
    batch_blocks = max(1, min(batch_blocks, B))
    TB = pl.cdiv(B, batch_blocks)          # sequences per grid step
    Bp = TB * batch_blocks
    T8 = ((T + 7) // 8) * 8                # sublane-aligned row count

    # causal left-pad along T (== F.pad(x, (0, 0, W-1, 0))) + alignment pads
    xp = jnp.pad(x, ((0, Bp - B), (W - 1, T8 - T), (0, 0)))

    # compact weight stacks: (3, W, C) with [g, k, c] = w_g[c, k]; biases (3, C)
    w_stack = jnp.transpose(
        jnp.stack([params["rtg_w"], params["obs_w"], params["act_w"]]), (0, 2, 1))
    b_stack = jnp.stack([params["rtg_b"], params["obs_b"], params["act_b"]])

    # per-row group id, shipped as a tiny (T8, 1) int32 table
    tmod3 = (jnp.arange(T8, dtype=jnp.int32) % 3).reshape(T8, 1)

    common_specs = [
        pl.BlockSpec((TB, T8 + W - 1, C), lambda i: (i, 0, 0)),
        pl.BlockSpec((T8, 1), lambda i: (0, 0)),
        pl.BlockSpec((3, W, C), lambda i: (0, 0, 0)),
        pl.BlockSpec((3, C), lambda i: (0, 0)),
    ]
    out_spec = pl.BlockSpec((TB, T8, C), lambda i: (i, 0, 0))
    out_shape = jax.ShapeDtypeStruct((Bp, T8, C), x.dtype)
    cparams = pltpu.CompilerParams(dimension_semantics=("parallel",))

    if conv_proj:
        fcw_t = params["fc_w"].T                               # (C, C) pre-transposed
        bias_eff = b_stack @ fcw_t + params["fc_b"][None, :]   # fold bias through proj
        kernel = functools.partial(_conv_proj_kernel, T8=T8, W=W, TB=TB)
        out = pl.pallas_call(
            kernel,
            out_shape=out_shape,
            grid=(batch_blocks,),
            in_specs=common_specs + [pl.BlockSpec((C, C), lambda i: (0, 0))],
            out_specs=out_spec,
            compiler_params=cparams,
        )(xp, tmod3, w_stack, bias_eff, fcw_t)
    else:
        kernel = functools.partial(_conv_noproj_kernel, T8=T8, W=W, TB=TB)
        out = pl.pallas_call(
            kernel,
            out_shape=out_shape,
            grid=(batch_blocks,),
            in_specs=common_specs,
            out_specs=out_spec,
            compiler_params=cparams,
        )(xp, tmod3, w_stack, b_stack)

    return out[:B, :T, :]


# ---------------------------------------------------------------------------
# Pure-JAX reference of the PyTorch forward (eval mode) for validation.
# ---------------------------------------------------------------------------
def convolution_reference(x, params, *, window_size, conv_proj=True):
    B, T, C = x.shape
    W = window_size
    xp = jnp.pad(x, ((0, 0), (W - 1, 0), (0, 0)))

    def dconv(w, b):  # depthwise causal conv1d, w: (C, W), b: (C,)
        out = jnp.zeros((B, T, C), x.dtype)
        for k in range(W):
            out = out + xp[:, k:k + T, :] * w[:, k][None, None, :]
        return out + b[None, None, :]

    rtg = dconv(params["rtg_w"], params["rtg_b"])
    obs = dconv(params["obs_w"], params["obs_b"])
    act = dconv(params["act_w"], params["act_b"])
    m = (jnp.arange(T) % 3)[None, :, None]
    out = jnp.where(m == 0, rtg, jnp.where(m == 1, obs, act))
    if conv_proj:
        out = out @ params["fc_w"].T + params["fc_b"]
    return out


def init_params(key, hidden_size, window_size):
    C, W = hidden_size, window_size
    ks = jax.random.split(key, 8)
    conv_bound = 1.0 / (W ** 0.5)   # PyTorch depthwise Conv1d default init bound
    lin_bound = 1.0 / (C ** 0.5)    # PyTorch Linear default init bound
    u = lambda k, shape, b: jax.random.uniform(k, shape, jnp.float32, -b, b)
    return {
        "rtg_w": u(ks[0], (C, W), conv_bound), "rtg_b": u(ks[1], (C,), conv_bound),
        "obs_w": u(ks[2], (C, W), conv_bound), "obs_b": u(ks[3], (C,), conv_bound),
        "act_w": u(ks[4], (C, W), conv_bound), "act_b": u(ks[5], (C,), conv_bound),
        "fc_w": u(ks[6], (C, C), lin_bound), "fc_b": u(ks[7], (C,), lin_bound),
    }


if __name__ == "__main__":
    # config: n_embd=32, window_size=4
    C, W = 32, 4
    key = jax.random.PRNGKey(0)
    k_x, k_p = jax.random.split(key)
    params = init_params(k_p, C, W)

    def check(B, T, conv_proj, **kw):
        x = jax.random.normal(jax.random.fold_in(k_x, 1000 * B + T), (B, T, C),
                              jnp.float32)
        out = jax.block_until_ready(
            convolution_forward(x, params, window_size=W, conv_proj=conv_proj, **kw))
        ref = convolution_reference(x, params, window_size=W, conv_proj=conv_proj)
        assert out.shape == (B, T, C)
        assert jnp.allclose(out, ref, atol=1e-4, rtol=1e-4), (
            f"mismatch vs reference (B={B}, T={T}, conv_proj={conv_proj}, kw={kw})")

    check(2, 12, True)                    # default: grid=(2,), TB=1 (2 parallel steps)
    check(3, 12, True)                    # TB=2 block, padded batch, flattened matmul
    check(2, 12, True, batch_blocks=1)    # single max block (v5e/v6e style), TB=2
    check(2, 12, False)                   # no-projection variant (no identity matmul)

    print("KERNEL_OK")
</pallas_src>

<mosaic_0001>
module attributes {stable_mosaic.version = 11 : i64} {
  func.func @_conv_proj_kernel(%arg0: i32, %arg1: memref<1x19x32xf32, #tpu.memory_space<vmem>>, %arg2: memref<16x1xi32, #tpu.memory_space<vmem>>, %arg3: memref<3x4x32xf32, #tpu.memory_space<vmem>>, %arg4: memref<3x32xf32, #tpu.memory_space<vmem>>, %arg5: memref<32x32xf32, #tpu.memory_space<vmem>>, %arg6: memref<1x16x32xf32, #tpu.memory_space<vmem>>) attributes {dimension_semantics = [#tpu.dimension_semantics<parallel>], iteration_bounds = array<i64: 2>, scalar_prefetch = 0 : i64, scratch_operands = 0 : i64, tpu.core_type = #tpu.core_type<tc>, window_params = [{transform_indices = @transform_0, window_bounds = array<i64: 1, 19, 32>}, {pipeline_mode = #tpu.pipeline_mode<synchronous>, transform_indices = @transform_1, window_bounds = array<i64: 16, 1>}, {pipeline_mode = #tpu.pipeline_mode<synchronous>, transform_indices = @transform_2, window_bounds = array<i64: 3, 4, 32>}, {pipeline_mode = #tpu.pipeline_mode<synchronous>, transform_indices = @transform_3, window_bounds = array<i64: 3, 32>}, {pipeline_mode = #tpu.pipeline_mode<synchronous>, transform_indices = @transform_4, window_bounds = array<i64: 32, 32>}, {transform_indices = @transform_5, window_bounds = array<i64: 1, 16, 32>}]} {
    %c0 = arith.constant 0 : index
    %c0_0 = arith.constant 0 : index
    %0 = vector.load %arg2[%c0, %c0_0] : memref<16x1xi32, #tpu.memory_space<vmem>>, vector<16x1xi32>
    %c1_i32 = arith.constant 1 : i32
    %1 = vector.broadcast %c1_i32 : i32 to vector<16x1xi32>
    %2 = arith.cmpi eq, %0, %1 : vector<16x1xi32>
    %c2_i32 = arith.constant 2 : i32
    %3 = vector.broadcast %c2_i32 : i32 to vector<16x1xi32>
    %4 = arith.cmpi eq, %0, %3 : vector<16x1xi32>
    %c0_1 = arith.constant 0 : index
    %c0_2 = arith.constant 0 : index
    %c0_3 = arith.constant 0 : index
    %5 = vector.load %arg3[%c0_1, %c0_2, %c0_3] : memref<3x4x32xf32, #tpu.memory_space<vmem>>, vector<1x1x32xf32>
    %6 = vector.shape_cast %5 : vector<1x1x32xf32> to vector<32xf32>
    %c1 = arith.constant 1 : index
    %c0_4 = arith.constant 0 : index
    %c0_5 = arith.constant 0 : index
    %7 = vector.load %arg3[%c1, %c0_4, %c0_5] : memref<3x4x32xf32, #tpu.memory_space<vmem>>, vector<1x1x32xf32>
    %8 = vector.shape_cast %7 : vector<1x1x32xf32> to vector<32xf32>
    %c2 = arith.constant 2 : index
    %c0_6 = arith.constant 0 : index
    %c0_7 = arith.constant 0 : index
    %9 = vector.load %arg3[%c2, %c0_6, %c0_7] : memref<3x4x32xf32, #tpu.memory_space<vmem>>, vector<1x1x32xf32>
    %10 = vector.shape_cast %9 : vector<1x1x32xf32> to vector<32xf32>
    %11 = vector.shape_cast %2 : vector<16x1xi1> to vector<16x1xi1>
    %12 = vector.broadcast %11 : vector<16x1xi1> to vector<16x32xi1>
    %13 = vector.shape_cast %8 : vector<32xf32> to vector<1x32xf32>
    %14 = vector.broadcast %13 : vector<1x32xf32> to vector<16x32xf32>
    %15 = vector.shape_cast %6 : vector<32xf32> to vector<1x32xf32>
    %16 = vector.broadcast %15 : vector<1x32xf32> to vector<16x32xf32>
    %17 = arith.select %12, %14, %16 : vector<16x32xi1>, vector<16x32xf32>
    %18 = vector.shape_cast %4 : vector<16x1xi1> to vector<16x1xi1>
    %19 = vector.broadcast %18 : vector<16x1xi1> to vector<16x32xi1>
    %20 = vector.shape_cast %10 : vector<32xf32> to vector<1x32xf32>
    %21 = vector.broadcast %20 : vector<1x32xf32> to vector<16x32xf32>
    %22 = arith.select %19, %21, %17 : vector<16x32xi1>, vector<16x32xf32>
    %c0_8 = arith.constant 0 : index
    %c1_9 = arith.constant 1 : index
    %c0_10 = arith.constant 0 : index
    %23 = vector.load %arg3[%c0_8, %c1_9, %c0_10] : memref<3x4x32xf32, #tpu.memory_space<vmem>>, vector<1x1x32xf32>
    %24 = vector.shape_cast %23 : vector<1x1x32xf32> to vector<32xf32>
    %c1_11 = arith.constant 1 : index
    %c1_12 = arith.constant 1 : index
    %c0_13 = arith.constant 0 : index
    %25 = vector.load %arg3[%c1_11, %c1_12, %c0_13] : memref<3x4x32xf32, #tpu.memory_space<vmem>>, vector<1x1x32xf32>
    %26 = vector.shape_cast %25 : vector<1x1x32xf32> to vector<32xf32>
    %c2_14 = arith.constant 2 : index
    %c1_15 = arith.constant 1 : index
    %c0_16 = arith.constant 0 : index
    %27 = vector.load %arg3[%c2_14, %c1_15, %c0_16] : memref<3x4x32xf32, #tpu.memory_space<vmem>>, vector<1x1x32xf32>
    %28 = vector.shape_cast %27 : vector<1x1x32xf32> to vector<32xf32>
    %29 = vector.shape_cast %2 : vector<16x1xi1> to vector<16x1xi1>
    %30 = vector.broadcast %29 : vector<16x1xi1> to vector<16x32xi1>
    %31 = vector.shape_cast %26 : vector<32xf32> to vector<1x32xf32>
    %32 = vector.broadcast %31 : vector<1x32xf32> to vector<16x32xf32>
    %33 = vector.shape_cast %24 : vector<32xf32> to vector<1x32xf32>
    %34 = vector.broadcast %33 : vector<1x32xf32> to vector<16x32xf32>
    %35 = arith.select %30, %32, %34 : vector<16x32xi1>, vector<16x32xf32>
    %36 = vector.shape_cast %4 : vector<16x1xi1> to vector<16x1xi1>
    %37 = vector.broadcast %36 : vector<16x1xi1> to vector<16x32xi1>
    %38 = vector.shape_cast %28 : vector<32xf32> to vector<1x32xf32>
    %39 = vector.broadcast %38 : vector<1x32xf32> to vector<16x32xf32>
    %40 = arith.select %37, %39, %35 : vector<16x32xi1>, vector<16x32xf32>
    %c0_17 = arith.constant 0 : index
    %c2_18 = arith.constant 2 : index
    %c0_19 = arith.constant 0 : index
    %41 = vector.load %arg3[%c0_17, %c2_18, %c0_19] : memref<3x4x32xf32, #tpu.memory_space<vmem>>, vector<1x1x32xf32>
    %42 = vector.shape_cast %41 : vector<1x1x32xf32> to vector<32xf32>
    %c1_20 = arith.constant 1 : index
    %c2_21 = arith.constant 2 : index
    %c0_22 = arith.constant 0 : index
    %43 = vector.load %arg3[%c1_20, %c2_21, %c0_22] : memref<3x4x32xf32, #tpu.memory_space<vmem>>, vector<1x1x32xf32>
    %44 = vector.shape_cast %43 : vector<1x1x32xf32> to vector<32xf32>
    %c2_23 = arith.constant 2 : index
    %c2_24 = arith.constant 2 : index
    %c0_25 = arith.constant 0 : index
    %45 = vector.load %arg3[%c2_23, %c2_24, %c0_25] : memref<3x4x32xf32, #tpu.memory_space<vmem>>, vector<1x1x32xf32>
    %46 = vector.shape_cast %45 : vector<1x1x32xf32> to vector<32xf32>
    %47 = vector.shape_cast %2 : vector<16x1xi1> to vector<16x1xi1>
    %48 = vector.broadcast %47 : vector<16x1xi1> to vector<16x32xi1>
    %49 = vector.shape_cast %44 : vector<32xf32> to vector<1x32xf32>
    %50 = vector.broadcast %49 : vector<1x32xf32> to vector<16x32xf32>
    %51 = vector.shape_cast %42 : vector<32xf32> to vector<1x32xf32>
    %52 = vector.broadcast %51 : vector<1x32xf32> to vector<16x32xf32>
    %53 = arith.select %48, %50, %52 : vector<16x32xi1>, vector<16x32xf32>
    %54 = vector.shape_cast %4 : vector<16x1xi1> to vector<16x1xi1>
    %55 = vector.broadcast %54 : vector<16x1xi1> to vector<16x32xi1>
    %56 = vector.shape_cast %46 : vector<32xf32> to vector<1x32xf32>
    %57 = vector.broadcast %56 : vector<1x32xf32> to vector<16x32xf32>
    %58 = arith.select %55, %57, %53 : vector<16x32xi1>, vector<16x32xf32>
    %c0_26 = arith.constant 0 : index
    %c3 = arith.constant 3 : index
    %c0_27 = arith.constant 0 : index
    %59 = vector.load %arg3[%c0_26, %c3, %c0_27] : memref<3x4x32xf32, #tpu.memory_space<vmem>>, vector<1x1x32xf32>
    %60 = vector.shape_cast %59 : vector<1x1x32xf32> to vector<32xf32>
    %c1_28 = arith.constant 1 : index
    %c3_29 = arith.constant 3 : index
    %c0_30 = arith.constant 0 : index
    %61 = vector.load %arg3[%c1_28, %c3_29, %c0_30] : memref<3x4x32xf32, #tpu.memory_space<vmem>>, vector<1x1x32xf32>
    %62 = vector.shape_cast %61 : vector<1x1x32xf32> to vector<32xf32>
    %c2_31 = arith.constant 2 : index
    %c3_32 = arith.constant 3 : index
    %c0_33 = arith.constant 0 : index
    %63 = vector.load %arg3[%c2_31, %c3_32, %c0_33] : memref<3x4x32xf32, #tpu.memory_space<vmem>>, vector<1x1x32xf32>
    %64 = vector.shape_cast %63 : vector<1x1x32xf32> to vector<32xf32>
    %65 = vector.shape_cast %2 : vector<16x1xi1> to vector<16x1xi1>
    %66 = vector.broadcast %65 : vector<16x1xi1> to vector<16x32xi1>
    %67 = vector.shape_cast %62 : vector<32xf32> to vector<1x32xf32>
    %68 = vector.broadcast %67 : vector<1x32xf32> to vector<16x32xf32>
    %69 = vector.shape_cast %60 : vector<32xf32> to vector<1x32xf32>
    %70 = vector.broadcast %69 : vector<1x32xf32> to vector<16x32xf32>
    %71 = arith.select %66, %68, %70 : vector<16x32xi1>, vector<16x32xf32>
    %72 = vector.shape_cast %4 : vector<16x1xi1> to vector<16x1xi1>
    %73 = vector.broadcast %72 : vector<16x1xi1> to vector<16x32xi1>
    %74 = vector.shape_cast %64 : vector<32xf32> to vector<1x32xf32>
    %75 = vector.broadcast %74 : vector<1x32xf32> to vector<16x32xf32>
    %76 = arith.select %73, %75, %71 : vector<16x32xi1>, vector<16x32xf32>
    %c0_34 = arith.constant 0 : index
    %c0_35 = arith.constant 0 : index
    %c0_36 = arith.constant 0 : index
    %77 = vector.load %arg1[%c0_34, %c0_35, %c0_36] : memref<1x19x32xf32, #tpu.memory_space<vmem>>, vector<1x19x32xf32>
    %78 = vector.shape_cast %77 : vector<1x19x32xf32> to vector<19x32xf32>
    %79 = vector.extract_strided_slice %78 {offsets = [0, 0], sizes = [16, 32], strides = [1, 1]} : vector<19x32xf32> to vector<16x32xf32>
    %80 = arith.mulf %79, %22 : vector<16x32xf32>
    %81 = vector.extract_strided_slice %78 {offsets = [1, 0], sizes = [16, 32], strides = [1, 1]} : vector<19x32xf32> to vector<16x32xf32>
    %82 = arith.mulf %81, %40 : vector<16x32xf32>
    %83 = arith.addf %80, %82 : vector<16x32xf32>
    %84 = vector.extract_strided_slice %78 {offsets = [2, 0], sizes = [16, 32], strides = [1, 1]} : vector<19x32xf32> to vector<16x32xf32>
    %85 = arith.mulf %84, %58 : vector<16x32xf32>
    %86 = arith.addf %83, %85 : vector<16x32xf32>
    %87 = vector.extract_strided_slice %78 {offsets = [3, 0], sizes = [16, 32], strides = [1, 1]} : vector<19x32xf32> to vector<16x32xf32>
    %88 = arith.mulf %87, %76 : vector<16x32xf32>
    %89 = arith.addf %86, %88 : vector<16x32xf32>
    %c0_37 = arith.constant 0 : index
    %c0_38 = arith.constant 0 : index
    %90 = vector.load %arg4[%c0_37, %c0_38] : memref<3x32xf32, #tpu.memory_space<vmem>>, vector<1x32xf32>
    %91 = vector.shape_cast %90 : vector<1x32xf32> to vector<32xf32>
    %c1_39 = arith.constant 1 : index
    %c0_40 = arith.constant 0 : index
    %92 = vector.load %arg4[%c1_39, %c0_40] : memref<3x32xf32, #tpu.memory_space<vmem>>, vector<1x32xf32>
    %93 = vector.shape_cast %92 : vector<1x32xf32> to vector<32xf32>
    %c2_41 = arith.constant 2 : index
    %c0_42 = arith.constant 0 : index
    %94 = vector.load %arg4[%c2_41, %c0_42] : memref<3x32xf32, #tpu.memory_space<vmem>>, vector<1x32xf32>
    %95 = vector.shape_cast %94 : vector<1x32xf32> to vector<32xf32>
    %96 = vector.shape_cast %2 : vector<16x1xi1> to vector<16x1xi1>
    %97 = vector.broadcast %96 : vector<16x1xi1> to vector<16x32xi1>
    %98 = vector.shape_cast %93 : vector<32xf32> to vector<1x32xf32>
    %99 = vector.broadcast %98 : vector<1x32xf32> to vector<16x32xf32>
    %100 = vector.shape_cast %91 : vector<32xf32> to vector<1x32xf32>
    %101 = vector.broadcast %100 : vector<1x32xf32> to vector<16x32xf32>
    %102 = arith.select %97, %99, %101 : vector<16x32xi1>, vector<16x32xf32>
    %103 = vector.shape_cast %4 : vector<16x1xi1> to vector<16x1xi1>
    %104 = vector.broadcast %103 : vector<16x1xi1> to vector<16x32xi1>
    %105 = vector.shape_cast %95 : vector<32xf32> to vector<1x32xf32>
    %106 = vector.broadcast %105 : vector<1x32xf32> to vector<16x32xf32>
    %107 = arith.select %104, %106, %102 : vector<16x32xi1>, vector<16x32xf32>
    %c0_43 = arith.constant 0 : index
    %c0_44 = arith.constant 0 : index
    %108 = vector.load %arg5[%c0_43, %c0_44] : memref<32x32xf32, #tpu.memory_space<vmem>>, vector<32x32xf32>
    %cst = arith.constant dense<0.000000e+00> : vector<16x32xf32>
    %109 = tpu.matmul %89, %108, %cst {dimension_numbers = #tpu.dot_dimension_numbers<[1], [0], [0], [1], [0, 0, 1, 1], [], []>} : vector<16x32xf32>, vector<32x32xf32>, vector<16x32xf32> -> vector<16x32xf32>
    %110 = arith.addf %109, %107 : vector<16x32xf32>
    %c0_45 = arith.constant 0 : index
    %c0_46 = arith.constant 0 : index
    %c0_47 = arith.constant 0 : index
    %111 = vector.load %arg6[%c0_45, %c0_46, %c0_47] : memref<1x16x32xf32, #tpu.memory_space<vmem>>, vector<1x16x32xf32>
    %112 = vector.shape_cast %111 : vector<1x16x32xf32> to vector<16x32xf32>
    %113 = vector.shape_cast %110 : vector<16x32xf32> to vector<1x16x32xf32>
    tpu.vector_store %arg6[%c0_45, %c0_46, %c0_47], %113 {strides = array<i32>} : memref<1x16x32xf32, #tpu.memory_space<vmem>>, vector<1x16x32xf32>,
    return
  }
  func.func @transform_0(%arg0: i32) -> (i32, i32, i32) {
    %c0_i32 = arith.constant 0 : i32
    %c0_i32_0 = arith.constant 0 : i32
    %c0_i32_1 = arith.constant 0 : i32
    return %arg0, %c0_i32, %c0_i32_0 : i32, i32, i32
  }
  func.func @transform_1(%arg0: i32) -> (i32, i32) {
    %c0_i32 = arith.constant 0 : i32
    %c0_i32_0 = arith.constant 0 : i32
    %c0_i32_1 = arith.constant 0 : i32
    return %c0_i32, %c0_i32_0 : i32, i32
  }
  func.func @transform_2(%arg0: i32) -> (i32, i32, i32) {
    %c0_i32 = arith.constant 0 : i32
    %c0_i32_0 = arith.constant 0 : i32
    %c0_i32_1 = arith.constant 0 : i32
    %c0_i32_2 = arith.constant 0 : i32
    return %c0_i32, %c0_i32_0, %c0_i32_1 : i32, i32, i32
  }
  func.func @transform_3(%arg0: i32) -> (i32, i32) {
    %c0_i32 = arith.constant 0 : i32
    %c0_i32_0 = arith.constant 0 : i32
    %c0_i32_1 = arith.constant 0 : i32
    return %c0_i32, %c0_i32_0 : i32, i32
  }
  func.func @transform_4(%arg0: i32) -> (i32, i32) {
    %c0_i32 = arith.constant 0 : i32
    %c0_i32_0 = arith.constant 0 : i32
    %c0_i32_1 = arith.constant 0 : i32
    return %c0_i32, %c0_i32_0 : i32, i32
  }
  func.func @transform_5(%arg0: i32) -> (i32, i32, i32) {
    %c0_i32 = arith.constant 0 : i32
    %c0_i32_0 = arith.constant 0 : i32
    %c0_i32_1 = arith.constant 0 : i32
    return %arg0, %c0_i32, %c0_i32_0 : i32, i32, i32
  }
}

</mosaic_0001>

<llo_original>
// kernel: tpu_custom_call.1
$region0: #{tpu_custom_call.1}
  #allocation0 [shape = 'u32[]', space=smem, size = 0x4, offset = 0x4, fixed_abs, tag = 'smem constant byte address 0x4 - core index']
  #allocation1 [shape = 'u32[72,128]{1,0:T(1,128)}', space=vmem, size = 0x9000, scoped, tag = 'internal scratch']
  %s0 = inlined_call_operand.vmem [shape: f32[2,19,32], index: 0, kind: input, shape index: {}]
  %s1 = inlined_call_operand.vmem [shape: s32[16,1], index: 1, kind: input, shape index: {}]
  %s2 = inlined_call_operand.vmem [shape: f32[3,4,32], index: 2, kind: input, shape index: {}]
  %s3 = inlined_call_operand.vmem [shape: f32[3,32], index: 3, kind: input, shape index: {}]
  %s4 = inlined_call_operand.vmem [shape: f32[32,32], index: 4, kind: input, shape index: {}]
  %s5 = inlined_call_operand.hbm [shape: f32[2,16,32], index: 5, kind: output, shape index: {}]
  %s6 = sld [smem:[#allocation0]]
  $region53: #{tpu_custom_call.1} parent=0
    _
  %s8 = ssub.s32 1, %s6
  %s9 = scalar_select 0, %s8, %s6
  $region1: #{tpu_custom_call.1} parent=0
    #allocation2 [shape = 'u8[16384]{0}', space=vmem, size = 0x4000, scoped, tag = 'output window, operand 0']
    #allocation3 [shape = 's32[2]{0}', space=sflag, size = 0x8, scoped, tag = 'scoped memory for tpu_custom_call.1']
    %10 = vsyncpa [#allocation3], 0
    %s11 = scalar_lea.sflag [#allocation3], 1
    %12 = vsyncpa %s11, 0
    loop: start=0, step=1, limit=4
    $region2: #{tpu_custom_call.1} parent=1 // loop_pre_header
      _
    $region3: #{tpu_custom_call.1} parent=1 // loop_header
      %s14 = sphi 0, %s18
      %p15 = scmp.ge.s32.totalorder %s14, 4
      %s24 = sphi 0, %s26
      %s27 = sphi 0, %s24
      %s28 = sphi 0, %s27
      %s44 = sphi 0, %s28
      %s48 = sphi 0, %s48
      %s50 = sphi 0, %s48
      %s51 = sphi 0, %s50
      %s65 = sphi 0, %s51
      %s69 = sphi 0, %s69
      %s71 = sphi 0, %s69
      %s72 = sphi 0, %s71
      %s86 = sphi 0, %s72
      %s90 = sphi 0, %s90
      %s92 = sphi 0, %s90
      %s93 = sphi 0, %s92
      %s107 = sphi 0, %s93
      %s111 = sphi 0, %s111
      %s113 = sphi 0, %s111
      %s114 = sphi 0, %s113
      %s128 = sphi 0, %s114
      %s134 = sphi 0, %s136
      %s137 = sphi 0, %s134
      %s138 = sphi 0, %s137
      %s154 = sphi 0, %s138
    $region4: #{tpu_custom_call.1} parent=1 // loop_header_branch
      %17 = sbr.rel (%p15) target = $region8
    $region5: #{tpu_custom_call.1} parent=1 // loop_body
      %s19 = ssub.s32 %s14, 1
      %s20 = ssub.s32 %s14, 2
      %s21 = sadd.s32 %s14, 1
      %s22 = ssub.s32 %s14, %s21
      %p23 = scmp.eq.s32.totalorder %s22, 0
      %s25 = sadd.s32 %s24, 1
      %s26 = scalar_select %p23, %s24, %s25
      %p29 = pneg %p23
      %p30 = scmp.eq.s32.totalorder %s14, 1
      %p31 = por %p29, %p30
      %p32 = scmp.ne.s32.totalorder %s24, %s27
      %p33 = scmp.eq.s32.totalorder %s14, 0
      %p34 = por %p32, %p33
      %p35 = scmp.ne.s32.totalorder %s24, %s27
      %p36 = scmp.eq.s32.totalorder %s19, 1
      %p37 = por %p35, %p36
      %p38 = scmp.ne.s32.totalorder %s27, %s28
      %p39 = scmp.eq.s32.totalorder %s19, 0
      %p40 = por %p38, %p39
      %p41 = scmp.ne.s32.totalorder %s27, %s28
      %p42 = scmp.eq.s32.totalorder %s20, 1
      %p43 = por %p41, %p42
      %p45 = scmp.ne.s32.totalorder %s28, %s44
      %p46 = scmp.eq.s32.totalorder %s20, 0
      %p47 = por %p45, %p46
      %s49 = sadd.s32 %s48, 1
      %p52 = scmp.eq.s32.totalorder %s14, 1
      %p53 = scmp.ne.s32.totalorder %s48, %s50
      %p54 = scmp.eq.s32.totalorder %s14, 0
      %p55 = por %p53, %p54
      %p56 = scmp.ne.s32.totalorder %s48, %s50
      %p57 = scmp.eq.s32.totalorder %s19, 1
      %p58 = por %p56, %p57
      %p59 = scmp.ne.s32.totalorder %s50, %s51
      %p60 = scmp.eq.s32.totalorder %s19, 0
      %p61 = por %p59, %p60
      %p62 = scmp.ne.s32.totalorder %s50, %s51
      %p63 = scmp.eq.s32.totalorder %s20, 1
      %p64 = por %p62, %p63
      %p66 = scmp.ne.s32.totalorder %s51, %s65
      %p67 = scmp.eq.s32.totalorder %s20, 0
      %p68 = por %p66, %p67
      %s70 = sadd.s32 %s69, 1
      %p73 = scmp.eq.s32.totalorder %s14, 1
      %p74 = scmp.ne.s32.totalorder %s69, %s71
      %p75 = scmp.eq.s32.totalorder %s14, 0
      %p76 = por %p74, %p75
      %p77 = scmp.ne.s32.totalorder %s69, %s71
      %p78 = scmp.eq.s32.totalorder %s19, 1
      %p79 = por %p77, %p78
      %p80 = scmp.ne.s32.totalorder %s71, %s72
      %p81 = scmp.eq.s32.totalorder %s19, 0
      %p82 = por %p80, %p81
      %p83 = scmp.ne.s32.totalorder %s71, %s72
      %p84 = scmp.eq.s32.totalorder %s20, 1
      %p85 = por %p83, %p84
      %p87 = scmp.ne.s32.totalorder %s72, %s86
      %p88 = scmp.eq.s32.totalorder %s20, 0
      %p89 = por %p87, %p88
      %s91 = sadd.s32 %s90, 1
      %p94 = scmp.eq.s32.totalorder %s14, 1
      %p95 = scmp.ne.s32.totalorder %s90, %s92
      %p96 = scmp.eq.s32.totalorder %s14, 0
      %p97 = por %p95, %p96
      %p98 = scmp.ne.s32.totalorder %s90, %s92
      %p99 = scmp.eq.s32.totalorder %s19, 1
      %p100 = por %p98, %p99
      %p101 = scmp.ne.s32.totalorder %s92, %s93
      %p102 = scmp.eq.s32.totalorder %s19, 0
      %p103 = por %p101, %p102
      %p104 = scmp.ne.s32.totalorder %s92, %s93
      %p105 = scmp.eq.s32.totalorder %s20, 1
      %p106 = por %p104, %p105
      %p108 = scmp.ne.s32.totalorder %s93, %s107
      %p109 = scmp.eq.s32.totalorder %s20, 0
      %p110 = por %p108, %p109
      %s112 = sadd.s32 %s111, 1
      %p115 = scmp.eq.s32.totalorder %s14, 1
      %p116 = scmp.ne.s32.totalorder %s111, %s113
      %p117 = scmp.eq.s32.totalorder %s14, 0
      %p118 = por %p116, %p117
      %p119 = scmp.ne.s32.totalorder %s111, %s113
      %p120 = scmp.eq.s32.totalorder %s19, 1
      %p121 = por %p119, %p120
      %p122 = scmp.ne.s32.totalorder %s113, %s114
      %p123 = scmp.eq.s32.totalorder %s19, 0
      %p124 = por %p122, %p123
      %p125 = scmp.ne.s32.totalorder %s113, %s114
      %p126 = scmp.eq.s32.totalorder %s20, 1
      %p127 = por %p125, %p126
      %p129 = scmp.ne.s32.totalorder %s114, %s128
      %p130 = scmp.eq.s32.totalorder %s20, 0
      %p131 = por %p129, %p130
      %s132 = ssub.s32 %s14, %s21
      %p133 = scmp.eq.s32.totalorder %s132, 0
      %s135 = sadd.s32 %s134, 1
      %s136 = scalar_select %p133, %s134, %s135
      %p139 = pneg %p133
      %p140 = scmp.eq.s32.totalorder %s14, 1
      %p141 = por %p139, %p140
      %p142 = scmp.ne.s32.totalorder %s134, %s137
      %p143 = scmp.eq.s32.totalorder %s14, 0
      %p144 = por %p142, %p143
      %p145 = scmp.ne.s32.totalorder %s134, %s137
      %p146 = scmp.eq.s32.totalorder %s19, 1
      %p147 = por %p145, %p146
      %p148 = scmp.ne.s32.totalorder %s137, %s138
      %p149 = scmp.eq.s32.totalorder %s19, 0
      %p150 = por %p148, %p149
      %p151 = scmp.ne.s32.totalorder %s137, %s138
      %p152 = scmp.eq.s32.totalorder %s20, 1
      %p153 = por %p151, %p152
      %p155 = scmp.ne.s32.totalorder %s138, %s154
      %p156 = scmp.eq.s32.totalorder %s20, 0
      %p157 = por %p155, %p156
      %p158 = scmp.le.s32.totalorder 1, %s14
      %p159 = scmp.lt.s32.totalorder %s14, 3
      %p160 = pnand %p158, %p159
      %p161 = pneg %p160
      // Predicated region
      $region9: #{tpu_custom_call.1} parent=5 // pred_check
        _
      $region10: #{tpu_custom_call.1} parent=5 // pred_check_branch
        %163 = sbr.rel (%p160) target = $region12
      $region11: #{tpu_custom_call.1} parent=5 // pred_region
        %s164 = ssub.s32 %s14, 1
        // Predicated region
        $region13: #{tpu_custom_call.1} parent=11 // pred_check
          %p165 = pneg %p61
        $region14: #{tpu_custom_call.1} parent=11 // pred_check_branch
          %167 = sbr.rel (%p165) target = $region16
        $region15: #{tpu_custom_call.1} parent=11 // pred_region
          _
        $region16: #{tpu_custom_call.1} parent=11 // pred_fallthru
          _
        // Predicated region
        $region17: #{tpu_custom_call.1} parent=11 // pred_check
          %p168 = pneg %p82
        $region18: #{tpu_custom_call.1} parent=11 // pred_check_branch
          %170 = sbr.rel (%p168) target = $region20
        $region19: #{tpu_custom_call.1} parent=11 // pred_region
          _
        $region20: #{tpu_custom_call.1} parent=11 // pred_fallthru
          _
        // Predicated region
        $region21: #{tpu_custom_call.1} parent=11 // pred_check
          %p171 = pneg %p103
        $region22: #{tpu_custom_call.1} parent=11 // pred_check_branch
          %173 = sbr.rel (%p171) target = $region24
        $region23: #{tpu_custom_call.1} parent=11 // pred_region
          _
        $region24: #{tpu_custom_call.1} parent=11 // pred_fallthru
          _
        // Predicated region
        $region25: #{tpu_custom_call.1} parent=11 // pred_check
          %p174 = pneg %p124
        $region26: #{tpu_custom_call.1} parent=11 // pred_check_branch
          %176 = sbr.rel (%p174) target = $region28
        $region27: #{tpu_custom_call.1} parent=11 // pred_region
          _
        $region28: #{tpu_custom_call.1} parent=11 // pred_fallthru
          _
      $region12: #{tpu_custom_call.1} parent=5 // pred_fallthru
        _
      %p177 = scmp.lt.s32.totalorder %s14, 2
      // Predicated region
      $region29: #{tpu_custom_call.1} parent=5 // pred_check
        %p178 = pneg %p177
      $region30: #{tpu_custom_call.1} parent=5 // pred_check_branch
        %180 = sbr.rel (%p178) target = $region32
      $region31: #{tpu_custom_call.1} parent=5 // pred_region
        // Predicated region
        $region33: #{tpu_custom_call.1} parent=31 // pred_check
          %p181 = pneg %p34
        $region34: #{tpu_custom_call.1} parent=31 // pred_check_branch
          %183 = sbr.rel (%p181) target = $region36
        $region35: #{tpu_custom_call.1} parent=31 // pred_region
          %p184 = scmp.lt.s32.totalorder %s14, 1
          %s185 = scalar_select %p184, %s14, 1
          %s186 = smul.addr %s185, 3
          %s187 = smul.addr %s186, 8
          %s188 = scalar_lea.vmem %s0, %s187
        $region36: #{tpu_custom_call.1} parent=31 // pred_fallthru
          _
      $region32: #{tpu_custom_call.1} parent=5 // pred_fallthru
        _
      %p189 = scmp.le.s32.totalorder 1, %s14
      %p190 = scmp.lt.s32.totalorder %s14, 3
      %p191 = pnand %p189, %p190
      %p192 = pneg %p191
      // Predicated region
      $region37: #{tpu_custom_call.1} parent=5 // pred_check
        _
      $region38: #{tpu_custom_call.1} parent=5 // pred_check_branch
        %194 = sbr.rel (%p191) target = $region40
      $region39: #{tpu_custom_call.1} parent=5 // pred_region
        %s195 = ssub.s32 %s14, 1
        %p196 = scmp.lt.s32.totalorder %s19, 1
        %s197 = scalar_select %p196, %s19, 1
        %s198 = smul.addr %s197, 3
        %s199 = smul.addr %s198, 8
        %s200 = scalar_lea.vmem %s0, %s199
        %p201 = pneg %p40
        %p202 = pneg %p37
        %p203 = pneg %p61
        %p204 = pneg %p58
        %p205 = pneg %p82
        %p206 = pneg %p79
        %p207 = pneg %p103
        %p208 = pneg %p100
        %p209 = pneg %p124
        %p210 = pneg %p121
        %p211 = pneg %p150
        %p212 = pneg %p147
        %s213 = sand.u32 %s137, 1
        %s214 = scalar_lea.sflag [#allocation3], %s213
        %s215 = sand.u32 %s137, 1
        %s216 = smul.addr %s215, 16
        %s217 = scalar_lea.vmem [#allocation2], %s216
        %p218 = scmp.lt.s32.totalorder %s19, 1
        %s219 = scalar_select %p218, %s19, 1
        %s220 = smul.addr %s219, 3
        %s221 = smul.addr %s220, 8
        %s222 = scalar_lea.vmem %s0, %s221
        %v223 = vld [vmem:[%s1] sm:$0xff]
        %v224 = vld [vmem:[%s1 + $0x8] sm:$0xff]
        %vm225 = vcmp.eq.s32.totalorder %v223, 1
        %vm226 = vcmp.eq.s32.totalorder %v224, 1
        %vm227 = vcmp.eq.s32.totalorder %v223, 2
        %vm228 = vcmp.eq.s32.totalorder %v224, 2
        %v229 = vld [vmem:[%s2] sm:$0x1]
        %s230 = scalar_lea.vmem %s2, 4
        %v231 = vld [vmem:[%s230] sm:$0x1]
        %s232 = scalar_lea.vmem %s2, 8
        %v233 = vld [vmem:[%s232] sm:$0x1]
        %v234 = vsel %vm225, 1, 0
        %v235 = vsel %vm226, 1, 0
        %236 = vset.pattern.permute.xlu0 0
        %237 = vperm.xlu0 %236, %v234
        %v238 = vpop.permute.xlu0 %237
        %239 = vset.pattern.permute.xlu0 0
        %240 = vperm.xlu0 %239, %v235
        %v241 = vpop.permute.xlu0 %240
        %vm242 = vcmp.eq.s32.totalorder %v238, 1
        %vm243 = vcmp.eq.s32.totalorder %v241, 1
        %v244 = vperm.slane %v231, 0
        %v245 = vperm.slane %v229, 0
        %v246 = vsel %vm242, %v244, %v245
        %v247 = vsel %vm243, %v244, %v245
        %v248 = vsel %vm227, 1, 0
        %v249 = vsel %vm228, 1, 0
        %250 = vset.pattern.permute.xlu0 0
        %251 = vperm.xlu0 %250, %v248
        %v252 = vpop.permute.xlu0 %251
        %253 = vset.pattern.permute.xlu0 0
        %254 = vperm.xlu0 %253, %v249
        %v255 = vpop.permute.xlu0 %254
        %vm256 = vcmp.eq.s32.totalorder %v252, 1
        %vm257 = vcmp.eq.s32.totalorder %v255, 1
        %v258 = vperm.slane %v233, 0
        %v259 = vsel %vm256, %v258, %v246
        %v260 = vsel %vm257, %v258, %v247
        %v261 = vld [vmem:[%s2 + $0x1] sm:$0x1]
        %v262 = vld [vmem:[%s230 + $0x1] sm:$0x1]
        %v263 = vld [vmem:[%s232 + $0x1] sm:$0x1]
        %v264 = vperm.slane %v262, 0
        %v265 = vperm.slane %v261, 0
        %v266 = vsel %vm242, %v264, %v265
        %v267 = vsel %vm243, %v264, %v265
        %v268 = vperm.slane %v263, 0
        %v269 = vsel %vm256, %v268, %v266
        %v270 = vsel %vm257, %v268, %v267
        %v271 = vld [vmem:[%s2 + $0x2] sm:$0x1]
        %v272 = vld [vmem:[%s230 + $0x2] sm:$0x1]
        %v273 = vld [vmem:[%s232 + $0x2] sm:$0x1]
        %v274 = vperm.slane %v272, 0
        %v275 = vperm.slane %v271, 0
        %v276 = vsel %vm242, %v274, %v275
        %v277 = vsel %vm243, %v274, %v275
        %v278 = vperm.slane %v273, 0
        %v279 = vsel %vm256, %v278, %v276
        %v280 = vsel %vm257, %v278, %v277
        %v281 = vld [vmem:[%s2 + $0x3] sm:$0x1]
        %v282 = vld [vmem:[%s230 + $0x3] sm:$0x1]
        %v283 = vld [vmem:[%s232 + $0x3] sm:$0x1]
        %v284 = vperm.slane %v282, 0
        %v285 = vperm.slane %v281, 0
        %v286 = vsel %vm242, %v284, %v285
        %v287 = vsel %vm243, %v284, %v285
        %v288 = vperm.slane %v283, 0
        %v289 = vsel %vm256, %v288, %v286
        %v290 = vsel %vm257, %v288, %v287
        %v291 = vld [vmem:[%s222] sm:$0xff]
        %v292 = vld [vmem:[%s222 + $0x8] sm:$0xff]
        %v293 = vld [vmem:[%s222 + $0x10] sm:$0x7]
        %v294 = vmul.f32 %v291, %v259
        %v295 = vmul.f32 %v292, %v260
        %vm298 = vcmask 1040384
        %v299 = vrot.slane %v269, 7
        %v300 = vrot.slane %v270, 7
        %v301 = vsel %vm298, %v299, %v300
        %v305 = vmul.f32 %v291, %v299
        %v306 = vmul.f32 %v292, %v301
        %v307 = vmul.f32 %v293, %v300
        %vm311 = vcmask 1046528
        %v312 = vrot.slane %v305, 1
        %v313 = vrot.slane %v306, 1
        %v314 = vsel %vm311, %v312, %v313
        %v315 = vrot.slane %v307, 1
        %v316 = vsel %vm311, %v313, %v315
        %v319 = vadd.f32 %v294, %v314
        %v320 = vadd.f32 %v295, %v316
        %vm323 = vcmask 1041408
        %v324 = vrot.slane %v279, 6
        %v325 = vrot.slane %v280, 6
        %v326 = vsel %vm323, %v324, %v325
        %v330 = vmul.f32 %v291, %v324
        %v331 = vmul.f32 %v292, %v326
        %v332 = vmul.f32 %v293, %v325
        %vm336 = vcmask 1045504
        %v337 = vrot.slane %v330, 2
        %v338 = vrot.slane %v331, 2
        %v339 = vsel %vm336, %v337, %v338
        %v340 = vrot.slane %v332, 2
        %v341 = vsel %vm336, %v338, %v340
        %v344 = vadd.f32 %v319, %v339
        %v345 = vadd.f32 %v320, %v341
        %vm348 = vcmask 1042432
        %v349 = vrot.slane %v289, 5
        %v350 = vrot.slane %v290, 5
        %v351 = vsel %vm348, %v349, %v350
        %v355 = vmul.f32 %v291, %v349
        %v356 = vmul.f32 %v292, %v351
        %v357 = vmul.f32 %v293, %v350
        %vm361 = vcmask 1044480
        %v362 = vrot.slane %v355, 3
        %v363 = vrot.slane %v356, 3
        %v364 = vsel %vm361, %v362, %v363
        %v365 = vrot.slane %v357, 3
        %v366 = vsel %vm361, %v363, %v365
        %v369 = vadd.f32 %v344, %v364
        %v370 = vadd.f32 %v345, %v366
        %v371 = vld [vmem:[%s3] sm:$0x1]
        %v372 = vld [vmem:[%s3 + $0x1] sm:$0x1]
        %v373 = vld [vmem:[%s3 + $0x2] sm:$0x1]
        %v374 = vperm.slane %v372, 0
        %v375 = vperm.slane %v371, 0
        %v376 = vsel %vm242, %v374, %v375
        %v377 = vsel %vm243, %v374, %v375
        %v378 = vperm.slane %v373, 0
        %v379 = vsel %vm256, %v378, %v376
        %v380 = vsel %vm257, %v378, %v377
        %v381 = vld [vmem:[%s4] sm:$0xff]
        %v382 = vld [vmem:[%s4 + $0x8] sm:$0xff]
        %v383 = vld [vmem:[%s4 + $0x10] sm:$0xff]
        %v384 = vld [vmem:[%s4 + $0x18] sm:$0xff]
        %vm385 = vcmask 261120
        %v387 = vsel %vm385, %v369, 0
        %v390 = vsel %vm385, %v370, 0
        %392 = vmatpush.msra.mxu0 0.0
        %393 = vmatpush.msra.mxu0 0.0
        %394 = vmatpush.msra.mxu0 0.0
        %395 = vmatpush.msra.mxu0 0.0
        %396 = vmatpush.msra.mxu0 0.0
        %397 = vmatpush.msra.mxu0 0.0
        %398 = vmatpush.msra.mxu0 0.0
        %399 = vmatpush.msra.mxu0 0.0
        %400 = vmatpush.msra.mxu0 0.0
        %401 = vmatpush.msra.mxu0 0.0
        %402 = vmatpush.msra.mxu0 0.0
        %403 = vmatpush.msra.mxu0 0.0
        %404 = vmatpush.msra.mxu0 %v384
        %405 = vmatpush.msra.mxu0 %v383
        %406 = vmatpush.msra.mxu0 %v382
        %407 = vmatpush.msra.mxu0 %v381
        %408 = vmatmul.f32.gmra.mxu0 %v387
        %v409 = vpop.f32.mrf.mxu0
        %v410 = vadd.f32 %v379, %v409
        %411 = vmatmul.f32.gmra.mxu0 %v390
        %v412 = vpop.f32.mrf.mxu0
        %v413 = vadd.f32 %v380, %v412
        %414 = vdwg.mxu0
        %415 = vst.msk [vmem:[%s217] sm:$0xff] %vm385, %v410
        %416 = vst.msk [vmem:[%s217 + $0x8] sm:$0xff] %vm385, %v413
        %s417 = sand.u32 %s137, 1
        %s418 = scalar_lea.sflag [#allocation3], %s417
        %s419 = sand.u32 %s137, 1
        %s420 = smul.addr %s419, 16
        %s421 = scalar_lea.vmem [#allocation2], %s420
        // Predicated region
        $region41: #{tpu_custom_call.1} parent=39 // pred_check
          %p422 = pneg %p147
        $region42: #{tpu_custom_call.1} parent=39 // pred_check_branch
          %424 = sbr.rel (%p422) target = $region44
        $region43: #{tpu_custom_call.1} parent=39 // pred_region
          %426 = vsyncadd %s418, 0
          %s427 = smul.addr %s19, 2
          %s428 = smul.addr %s427, 8
          %s429 = scalar_lea.hbm %s5, %s428
          %s430 = sshll.u32 %s421, 4
          %s431 = int_to_ptr.vmem [resolvable:$true] %s430
          %s432 = sshll.u32 %s429, 4
          %s433 = int_to_ptr.hbm [resolvable:$true] %s432
          %438 = dma.vmem_to_hbm [thread:$0]  %s431, 256, %s433, %s418, 128, 128, 8
        $region44: #{tpu_custom_call.1} parent=39 // pred_fallthru
          _
      $region40: #{tpu_custom_call.1} parent=5 // pred_fallthru
        _
      %p439 = scmp.le.s32.totalorder 2, %s14
      // Predicated region
      $region45: #{tpu_custom_call.1} parent=5 // pred_check
        %p440 = pneg %p439
      $region46: #{tpu_custom_call.1} parent=5 // pred_check_branch
        %442 = sbr.rel (%p440) target = $region48
      $region47: #{tpu_custom_call.1} parent=5 // pred_region
        %s443 = ssub.s32 %s14, 2
        // Predicated region
        $region49: #{tpu_custom_call.1} parent=47 // pred_check
          %p444 = pneg %p153
        $region50: #{tpu_custom_call.1} parent=47 // pred_check_branch
          %446 = sbr.rel (%p444) target = $region52
        $region51: #{tpu_custom_call.1} parent=47 // pred_region
          %s447 = sand.u32 %s138, 1
          %s448 = scalar_lea.sflag [#allocation3], %s447
          %s449 = sand.u32 %s138, 1
          %s450 = smul.addr %s449, 16
          %s451 = scalar_lea.vmem [#allocation2], %s450
          %453 = dma.done %s448, 256
        $region52: #{tpu_custom_call.1} parent=47 // pred_fallthru
          _
      $region48: #{tpu_custom_call.1} parent=5 // pred_fallthru
        _
    $region6: #{tpu_custom_call.1} parent=1 // loop_footer
      %s18 = sadd.s32 1, %s14
    $region7: #{tpu_custom_call.1} parent=1 // loop_footer_branch
      %13 = sbr.rel target = $region3
    $region8: #{tpu_custom_call.1} parent=1 // loop_exit
      _
    %454 = vsyncpa [#allocation3], 1
    %s455 = scalar_lea.sflag [#allocation3], 1
    %456 = vsyncpa %s455, 1

</llo_original>
